<compile_context>
chip_gen: v5e
topology: v5e:2x2
jax: 0.10.0
libtpu: 0.0.40
codegen_flags: <defaults>
</compile_context>

<pallas_src>
import functools

import jax
import jax.numpy as jnp
from jax.experimental import pallas as pl
from jax.experimental.pallas import tpu as pltpu

_EPS = 1e-5  # BatchNorm1d eps (PyTorch default)


def _round_up(x, m):
    return (x + m - 1) // m * m


def _vmem_spec():
    return pl.BlockSpec(memory_space=pltpu.MemorySpace.VMEM)


# ------------------- row-tiled linear projections (bf16 MXU) -----------------

def _mm_bias_kernel(x_ref, w_ref, b_ref, o_ref):
    o_ref[...] = (jnp.dot(x_ref[...].astype(jnp.bfloat16), w_ref[...],
                          preferred_element_type=jnp.float32) + b_ref[...])


def _mm_kernel(x_ref, w_ref, o_ref):
    o_ref[...] = jnp.dot(x_ref[...].astype(jnp.bfloat16), w_ref[...],
                         preferred_element_type=jnp.float32)


def pallas_linear(x, w, b=None, tm=512):
    """y = x @ w (+ b).  Row-tiled grid (parallel -> megacore on v7x), weights
    resident (constant index_map), K zero-padded to a multiple of 128, bf16 MXU
    operands with f32 accumulate, f32 output."""
    m, k = x.shape
    n = w.shape[1]
    x = x.astype(jnp.float32)
    w = w.astype(jnp.bfloat16)

    kp = _round_up(k, 128)
    if kp != k:
        x = jnp.pad(x, ((0, 0), (0, kp - k)))
        w = jnp.pad(w, ((0, kp - k), (0, 0)))

    m8 = _round_up(max(m, 1), 8)
    tm = min(tm, m8)
    mp = _round_up(m8, tm)
    if mp != m:
        x = jnp.pad(x, ((0, mp - m), (0, 0)))

    grid = (mp // tm,)
    x_spec = pl.BlockSpec((tm, kp), lambda i: (i, 0))
    w_spec = pl.BlockSpec((kp, n), lambda i: (0, 0))
    o_spec = pl.BlockSpec((tm, n), lambda i: (i, 0))
    cparams = pltpu.CompilerParams(dimension_semantics=("parallel",),
                                   vmem_limit_bytes=32 * 1024 * 1024)

    if b is None:
        out = pl.pallas_call(
            _mm_kernel,
            out_shape=jax.ShapeDtypeStruct((mp, n), jnp.float32),
            grid=grid, in_specs=[x_spec, w_spec], out_specs=o_spec,
            compiler_params=cparams,
        )(x, w)
    else:
        b = b.astype(jnp.float32).reshape(1, n)
        b_spec = pl.BlockSpec((1, n), lambda i: (0, 0))
        out = pl.pallas_call(
            _mm_bias_kernel,
            out_shape=jax.ShapeDtypeStruct((mp, n), jnp.float32),
            grid=grid, in_specs=[x_spec, w_spec, b_spec], out_specs=o_spec,
            compiler_params=cparams,
        )(x, w, b)
    return out[:m] if mp != m else out


# ------------------- BatchNorm (training-mode batch stats) -------------------
# Whole-array on purpose: batch statistics need the full batch (see header TODO).

def _bn_kernel(x_ref, g_ref, b_ref, o_ref, *, relu):
    x = x_ref[...]
    m = jnp.mean(x, axis=0, keepdims=True)
    v = jnp.mean((x - m) ** 2, axis=0, keepdims=True)  # biased var (training mode)
    y = (x - m) * jax.lax.rsqrt(v + _EPS) * g_ref[...] + b_ref[...]
    if relu:
        y = jnp.maximum(y, 0.0)
    o_ref[...] = y


def pallas_batchnorm(x, gamma, beta, relu=False):
    return pl.pallas_call(
        functools.partial(_bn_kernel, relu=relu),
        out_shape=jax.ShapeDtypeStruct(x.shape, jnp.float32),
        in_specs=[_vmem_spec()] * 3,
        out_specs=_vmem_spec(),
    )(x.astype(jnp.float32), gamma, beta)


def _bn_res_relu_kernel(x_ref, g_ref, b_ref, r_ref, o_ref):
    x = x_ref[...]
    m = jnp.mean(x, axis=0, keepdims=True)
    v = jnp.mean((x - m) ** 2, axis=0, keepdims=True)
    y = (x - m) * jax.lax.rsqrt(v + _EPS) * g_ref[...] + b_ref[...]
    o_ref[...] = jnp.maximum(y + r_ref[...], 0.0)


def pallas_bn_residual_relu(x, gamma, beta, residual):
    return pl.pallas_call(
        _bn_res_relu_kernel,
        out_shape=jax.ShapeDtypeStruct(x.shape, jnp.float32),
        in_specs=[_vmem_spec()] * 4,
        out_specs=_vmem_spec(),
    )(x.astype(jnp.float32), gamma, beta, residual.astype(jnp.float32))


# ------------------- fused ResPair_Distance MLP ------------------------------

def _respair_kernel(x_ref,
                    w1, b1, g1, be1,
                    w2, b2, g2, be2,
                    w3, b3, g3, be3,
                    w4, b4, g4, be4,
                    w5, b5, g5, be5,
                    w6r, b6,
                    o_ref):
    """fc1/bn1/relu -> 3x ResLinear -> fc5/bn5/relu -> fc6/relu, fully fused.
    bf16 MXU matmuls, f32 accumulate + BN. fc6 runs on VPU/XLU (no 1-lane MXU)."""
    def bn(h, g, b):
        m = jnp.mean(h, axis=0, keepdims=True)
        v = jnp.mean((h - m) ** 2, axis=0, keepdims=True)
        return (h - m) * jax.lax.rsqrt(v + _EPS) * g[...] + b[...]

    def mm(h, w):
        return jnp.dot(h.astype(jnp.bfloat16), w[...],
                       preferred_element_type=jnp.float32)

    x = x_ref[...]
    h = jnp.maximum(bn(mm(x, w1) + b1[...], g1, be1), 0.0)
    for (w, bb, g, be) in ((w2, b2, g2, be2), (w3, b3, g3, be3), (w4, b4, g4, be4)):
        h = jnp.maximum(bn(mm(h, w) + bb[...], g, be) + h, 0.0)   # ResLinear
    h = jnp.maximum(bn(mm(h, w5) + b5[...], g5, be5), 0.0)
    o_ref[...] = jnp.maximum(
        jnp.sum(h * w6r[...], axis=1, keepdims=True) + b6[...], 0.0)


def pallas_respair(latent_a, latent_b, fill, p):
    """latent_a/latent_b: (P, 64) gathered endpoint latents; fill is the constant
    extra column of the original (P, 129) pair tensor, folded into fc1's bias."""
    x = jnp.concatenate([latent_a, latent_b], axis=1).astype(jnp.float32)  # (P, 128)
    b1_eff = p["b1"] + fill * p["w1f"]
    args = (x,
            p["w1"], b1_eff, p["g1"], p["be1"],
            p["w2"], p["b2"], p["g2"], p["be2"],
            p["w3"], p["b3"], p["g3"], p["be3"],
            p["w4"], p["b4"], p["g4"], p["be4"],
            p["w5"], p["b5"], p["g5"], p["be5"],
            p["w6r"], p["b6"])
    return pl.pallas_call(
        _respair_kernel,
        out_shape=jax.ShapeDtypeStruct((x.shape[0], 1), jnp.float32),
        in_specs=[_vmem_spec()] * len(args),
        out_specs=_vmem_spec(),
    )(*args)


# ------------------- GATv2Conv (heads=4, concat=False) -----------------------

def gatv2_conv(x, edge_index, edge_attr, p, num_nodes):
    """PyG GATv2Conv semantics: add_self_loops(fill_value='mean'), leaky_relu(0.2),
    per-target softmax, mean over heads (concat=False), final bias."""
    H, C = p["heads"], p["out_channels"]
    HC = H * C
    N = num_nodes
    E = edge_index.shape[1]
    src0, dst0 = edge_index[0], edge_index[1]

    # add_self_loops with fill_value='mean': loop edge_attr = scatter-mean by target.
    cnt = jax.ops.segment_sum(jnp.ones((E,), jnp.float32), dst0, num_segments=N)
    loop_attr = (jax.ops.segment_sum(edge_attr, dst0, num_segments=N)
                 / jnp.maximum(cnt, 1.0)[:, None])
    ar = jnp.arange(N, dtype=edge_index.dtype)
    src = jnp.concatenate([src0, ar])
    dst = jnp.concatenate([dst0, ar])
    ea = jnp.concatenate([edge_attr, loop_attr], axis=0)

    # fused lin_l | lin_r projection: x read once, wide 2*HC output.
    xlr = pallas_linear(x, p["Wlr"], p["blr"])                  # (N, 2*HC)
    xl = xlr[:, :HC].reshape(N, H, C)
    xr = xlr[:, HC:].reshape(N, H, C)
    ee = pallas_linear(ea, p["We"], None).reshape(-1, H, C)     # no-bias edge proj

    # TODO(synk): per-edge gather + segment softmax + scatter-sum is data-dependent
    # scatter/gather; kept in plain JAX glue (projections above are the matmul hot path).
    z = xl[src] + xr[dst] + ee                      # (E+N, H, C)
    z = jnp.where(z > 0, z, 0.2 * z)                # LeakyReLU(0.2)
    logits = jnp.sum(z * p["att"][None], axis=-1)   # (E+N, H)
    seg_max = jax.ops.segment_max(logits, dst, num_segments=N)
    ex = jnp.exp(logits - seg_max[dst])
    denom = jax.ops.segment_sum(ex, dst, num_segments=N)
    alpha = ex / denom[dst]
    msg = xl[src] * alpha[..., None]                # (E+N, H, C)
    out = jax.ops.segment_sum(msg, dst, num_segments=N)   # (N, H, C)
    out = jnp.mean(out, axis=1) + p["bias"]         # concat=False -> mean over heads
    return out


def res_gat(x, ei, ea, gat_p, bn_p, n):
    h = gatv2_conv(x, ei, ea, gat_p, n)
    return pallas_bn_residual_relu(h, bn_p["g"], bn_p["b"], x)


# ------------------- parameter init ------------------------------------------

def _dense(key, fan_in, fan_out, scale=0.1):
    return scale * jax.random.normal(key, (fan_in, fan_out), jnp.float32)


def init_gatv2(key, in_ch, out_ch, edge_dim, heads=4):
    ks = jax.random.split(key, 4)
    HC = heads * out_ch
    wl = _dense(ks[0], in_ch, HC)
    wr = _dense(ks[1], in_ch, HC)
    return dict(
        heads=heads, out_channels=out_ch,
        Wlr=jnp.concatenate([wl, wr], axis=1).astype(jnp.bfloat16),  # fused lin_l|lin_r
        blr=jnp.zeros((1, 2 * HC), jnp.float32),
        We=_dense(ks[2], edge_dim, HC).astype(jnp.bfloat16),
        att=0.1 * jax.random.normal(ks[3], (heads, out_ch), jnp.float32),
        bias=jnp.zeros((1, out_ch), jnp.float32),
    )


def _bn_params(f):
    return dict(g=jnp.ones((1, f), jnp.float32), b=jnp.zeros((1, f), jnp.float32))


def init_respair(key, dim=129):
    ks = jax.random.split(key, 6)
    ones = lambda f: jnp.ones((1, f), jnp.float32)
    zeros = lambda f: jnp.zeros((1, f), jnp.float32)
    w1_full = _dense(ks[0], dim, 256)                 # conceptually (129, 256)
    return dict(
        w1=w1_full[:dim - 1].astype(jnp.bfloat16),    # (128, 256) for the two latents
        w1f=w1_full[dim - 1:],                        # (1, 256) row of the fill column
        b1=zeros(256), g1=ones(256), be1=zeros(256),
        w2=_dense(ks[1], 256, 256).astype(jnp.bfloat16),
        b2=zeros(256), g2=ones(256), be2=zeros(256),
        w3=_dense(ks[2], 256, 256).astype(jnp.bfloat16),
        b3=zeros(256), g3=ones(256), be3=zeros(256),
        w4=_dense(ks[3], 256, 256).astype(jnp.bfloat16),
        b4=zeros(256), g4=ones(256), be4=zeros(256),
        w5=_dense(ks[4], 256, 32).astype(jnp.bfloat16),
        b5=zeros(32), g5=ones(32), be5=zeros(32),
        w6r=0.1 * jax.random.normal(ks[5], (1, 32), jnp.float32),  # fc6 weight row
        b6=zeros(1),
    )


def init_model(key, num_features, edge_dim):
    ks = jax.random.split(key, 12)
    return dict(
        top_init_norm=_bn_params(num_features),
        en_gat1=init_gatv2(ks[0], num_features, 256, edge_dim), en_bn1=_bn_params(256),
        en_gat2=init_gatv2(ks[1], 256, 256, edge_dim), en_bn2=_bn_params(256),
        en_gat3=init_gatv2(ks[2], 256, 256, edge_dim), en_bn3=_bn_params(256),
        en_gat4=init_gatv2(ks[3], 256, 256, edge_dim), en_bn4=_bn_params(256),
        en_gat5=init_gatv2(ks[4], 256, 32, edge_dim), en_bn5=_bn_params(32),
        charge_init_norm=_bn_params(1),
        charge_encode1=init_gatv2(ks[5], 1, 256, edge_dim), charge_bn1=_bn_params(256),
        charge_encode2=init_gatv2(ks[6], 256, 256, edge_dim), charge_bn2=_bn_params(256),
        charge_encode3=init_gatv2(ks[7], 256, 32, edge_dim), charge_bn3=_bn_params(32),
        bond_predict=init_respair(ks[8], 129),
        angle_predict=init_respair(ks[9], 129),
        dihedral_predict=init_respair(ks[10], 129),
        hop4_predict=init_respair(ks[11], 129),
    )


# ------------------- model forward -------------------------------------------

def topo_encoder(params, x, ei, ea, n):
    x = pallas_batchnorm(x, params["top_init_norm"]["g"], params["top_init_norm"]["b"])
    x = pallas_batchnorm(gatv2_conv(x, ei, ea, params["en_gat1"], n),
                         params["en_bn1"]["g"], params["en_bn1"]["b"], relu=True)
    x = res_gat(x, ei, ea, params["en_gat2"], params["en_bn2"], n)
    x = res_gat(x, ei, ea, params["en_gat3"], params["en_bn3"], n)
    x = res_gat(x, ei, ea, params["en_gat4"], params["en_bn4"], n)
    x = pallas_batchnorm(gatv2_conv(x, ei, ea, params["en_gat5"], n),
                         params["en_bn5"]["g"], params["en_bn5"]["b"], relu=True)
    return x


def charge_encoder(params, charge, ei, ea, n):
    c = pallas_batchnorm(charge, params["charge_init_norm"]["g"],
                         params["charge_init_norm"]["b"])
    c = pallas_batchnorm(gatv2_conv(c, ei, ea, params["charge_encode1"], n),
                         params["charge_bn1"]["g"], params["charge_bn1"]["b"], relu=True)
    c = res_gat(c, ei, ea, params["charge_encode2"], params["charge_bn2"], n)
    c = pallas_batchnorm(gatv2_conv(c, ei, ea, params["charge_encode3"], n),
                         params["charge_bn3"]["g"], params["charge_bn3"]["b"], relu=True)
    return c


def forward(params, data, charge):
    n = data["x"].shape[0]
    ei, ea = data["edge_index"], data["edge_attr"]
    top_latent = topo_encoder(params, data["x"], ei, ea, n)       # (N, 32)
    charge_latent = charge_encoder(params, charge, ei, ea, n)     # (N, 32)
    latent = jnp.concatenate([top_latent, charge_latent], axis=1)  # (N, 64)

    def head(idx, fill, p):
        # gathered endpoints (P,64)+(P,64); the constant fill column is folded
        # into fc1's bias inside pallas_respair (no (P,129) HBM tensor).
        return pallas_respair(latent[idx[0]], latent[idx[1]], fill, p)

    bond_dis = head(data["bonds_index"], 1.0, params["bond_predict"])
    angle_dis = head(data["angles_index"], 2.0, params["angle_predict"])
    dihedral_dis = head(data["dihedrals_index"], 3.0, params["dihedral_predict"])
    hop4_dis = head(data["hop4s_index"], 4.0, params["hop4_predict"])
    return latent, bond_dis, angle_dis, dihedral_dis, hop4_dis


# ------------------- demo -----------------------------------------------------

if __name__ == "__main__":
    key = jax.random.PRNGKey(0)
    num_features, edge_dim = 16, 4
    N, P = 8, 8
    ks = jax.random.split(key, 10)

    x = jax.random.normal(ks[0], (N, num_features), jnp.float32)
    charge = jax.random.normal(ks[1], (N, 1), jnp.float32)

    # bidirectional ring graph, no self-loops (GATv2 adds them itself)
    fwd = jnp.arange(N, dtype=jnp.int32)
    bwd = (jnp.arange(N, dtype=jnp.int32) + 1) % N
    edge_index = jnp.stack([jnp.concatenate([fwd, bwd]),
                            jnp.concatenate([bwd, fwd])])           # (2, 16)
    edge_attr = jax.random.normal(ks[2], (edge_index.shape[1], edge_dim), jnp.float32)

    def rand_pairs(kk):
        return jax.random.randint(kk, (2, P), 0, N).astype(jnp.int32)

    data = dict(x=x, edge_index=edge_index, edge_attr=edge_attr,
                bonds_index=rand_pairs(ks[3]),
                angles_index=rand_pairs(ks[4]),
                dihedrals_index=rand_pairs(ks[5]),
                hop4s_index=rand_pairs(ks[6]))

    params = init_model(ks[7], num_features, edge_dim)

    outs = forward(params, data, charge)
    jax.block_until_ready(outs)
    latent, bond_dis, angle_dis, dihedral_dis, hop4_dis = outs
    assert latent.shape == (N, 64)
    assert bond_dis.shape == (P, 1) and angle_dis.shape == (P, 1)
    assert dihedral_dis.shape == (P, 1) and hop4_dis.shape == (P, 1)
    print("KERNEL_OK")
</pallas_src>

<mosaic_0001>
module attributes {stable_mosaic.version = 11 : i64} {
  func.func @_bn_kernel(%arg0: memref<8x16xf32, #tpu.memory_space<vmem>>, %arg1: memref<1x16xf32, #tpu.memory_space<vmem>>, %arg2: memref<1x16xf32, #tpu.memory_space<vmem>>, %arg3: memref<8x16xf32, #tpu.memory_space<vmem>>) attributes {dimension_semantics = [], scalar_prefetch = 0 : i64, scratch_operands = 0 : i64, tpu.core_type = #tpu.core_type<tc>} {
    %c0 = arith.constant 0 : index
    %c0_0 = arith.constant 0 : index
    %0 = vector.load %arg0[%c0, %c0_0] : memref<8x16xf32, #tpu.memory_space<vmem>>, vector<8x16xf32>
    %cst = arith.constant dense<0.000000e+00> : vector<16xf32>
    %1 = vector.multi_reduction <add>, %0, %cst [0] : vector<8x16xf32> to vector<16xf32>
    %2 = vector.shape_cast %1 : vector<16xf32> to vector<1x16xf32>
    %cst_1 = arith.constant 8.000000e+00 : f32
    %3 = vector.broadcast %cst_1 : f32 to vector<1x16xf32>
    %4 = arith.divf %2, %3 : vector<1x16xf32>
    %5 = vector.broadcast %4 : vector<1x16xf32> to vector<8x16xf32>
    %6 = arith.subf %0, %5 : vector<8x16xf32>
    %7 = arith.mulf %6, %6 : vector<8x16xf32>
    %cst_2 = arith.constant dense<0.000000e+00> : vector<16xf32>
    %8 = vector.multi_reduction <add>, %7, %cst_2 [0] : vector<8x16xf32> to vector<16xf32>
    %9 = vector.shape_cast %8 : vector<16xf32> to vector<1x16xf32>
    %cst_3 = arith.constant 8.000000e+00 : f32
    %10 = vector.broadcast %cst_3 : f32 to vector<1x16xf32>
    %11 = arith.divf %9, %10 : vector<1x16xf32>
    %12 = vector.broadcast %4 : vector<1x16xf32> to vector<8x16xf32>
    %13 = arith.subf %0, %12 : vector<8x16xf32>
    %cst_4 = arith.constant 9.99999974E-6 : f32
    %14 = vector.broadcast %cst_4 : f32 to vector<1x16xf32>
    %15 = arith.addf %11, %14 : vector<1x16xf32>
    %16 = math.rsqrt %15 : vector<1x16xf32>
    %17 = vector.broadcast %16 : vector<1x16xf32> to vector<8x16xf32>
    %18 = arith.mulf %13, %17 : vector<8x16xf32>
    %c0_5 = arith.constant 0 : index
    %c0_6 = arith.constant 0 : index
    %19 = vector.load %arg1[%c0_5, %c0_6] : memref<1x16xf32, #tpu.memory_space<vmem>>, vector<1x16xf32>
    %20 = vector.broadcast %19 : vector<1x16xf32> to vector<8x16xf32>
    %21 = arith.mulf %18, %20 : vector<8x16xf32>
    %c0_7 = arith.constant 0 : index
    %c0_8 = arith.constant 0 : index
    %22 = vector.load %arg2[%c0_7, %c0_8] : memref<1x16xf32, #tpu.memory_space<vmem>>, vector<1x16xf32>
    %23 = vector.broadcast %22 : vector<1x16xf32> to vector<8x16xf32>
    %24 = arith.addf %21, %23 : vector<8x16xf32>
    %c0_9 = arith.constant 0 : index
    %c0_10 = arith.constant 0 : index
    %25 = vector.load %arg3[%c0_9, %c0_10] : memref<8x16xf32, #tpu.memory_space<vmem>>, vector<8x16xf32>
    tpu.vector_store %arg3[%c0_9, %c0_10], %24 {strides = array<i32>} : memref<8x16xf32, #tpu.memory_space<vmem>>, vector<8x16xf32>,
    return
  }
}

</mosaic_0001>

<llo_original>
// kernel: tpu_custom_call.1
$region0: #{tpu_custom_call.1}
  #allocation0 [shape = 'u32[]', space=smem, size = 0x4, offset = 0x4, fixed_abs, tag = 'smem constant byte address 0x4 - core index']
  #allocation1 [shape = 'u32[72,128]{1,0:T(1,128)}', space=vmem, size = 0x9000, scoped, tag = 'internal scratch']
  %s0 = inlined_call_operand.hbm [shape: f32[8,16], index: 0, kind: input, shape index: {}]
  %s1 = inlined_call_operand.hbm [shape: f32[1,16], index: 1, kind: input, shape index: {}]
  %s2 = inlined_call_operand.vmem [shape: f32[1,16], index: 2, kind: input, shape index: {}]
  %s3 = inlined_call_operand.hbm [shape: f32[8,16], index: 3, kind: output, shape index: {}]
  %s4 = sld [smem:[#allocation0]]
  $region30: #{tpu_custom_call.1} parent=0
    _
  %s6 = ssub.s32 1, %s4
  %s7 = scalar_select 0, %s6, %s4
  $region1: #{tpu_custom_call.1} parent=0
    #allocation2 [shape = 'u8[4096]{0}', space=vmem, size = 0x1000, scoped, tag = 'input window, operand 0, single buffered']
    #allocation3 [shape = 's32[1]{0}', space=sflag, size = 0x4, scoped, tag = 'scoped memory for tpu_custom_call.1']
    #allocation4 [shape = 's32[1]{0}', space=sflag, size = 0x4, scoped, tag = 'scoped memory for tpu_custom_call.1']
    #allocation5 [shape = 'u8[512]{0}', space=vmem, size = 0x400, scoped, tag = 'input window, operand 1, single buffered']
    #allocation6 [shape = 's32[1]{0}', space=sflag, size = 0x4, scoped, tag = 'scoped memory for tpu_custom_call.1']
    #allocation7 [shape = 'u8[4096]{0}', space=vmem, size = 0x1000, scoped, tag = 'output window, operand 0, single buffered']
    %8 = vsyncpa [#allocation3], 0
    %9 = vsyncpa [#allocation6], 0
    %10 = vsyncpa [#allocation4], 0
    // Predicated region
    $region2: #{tpu_custom_call.1} parent=1 // pred_check
      _
    $region3: #{tpu_custom_call.1} parent=1 // pred_check_branch
      %12 = sbr.rel (0) target = $region5
    $region4: #{tpu_custom_call.1} parent=1 // pred_region
      %14 = vsyncadd [#allocation3], 0
      %s16 = sshll.u32 %s0, 4
      %s17 = int_to_ptr.hbm [resolvable:$true] %s16
      %s18 = sshll.u32 [#allocation2], 4
      %s19 = int_to_ptr.vmem [resolvable:$true] %s18
      %21 = dma.hbm_to_vmem [thread:$0]  %s17, 128, %s19, [#allocation3]
    $region5: #{tpu_custom_call.1} parent=1 // pred_fallthru
      _
    // Predicated region
    $region6: #{tpu_custom_call.1} parent=1 // pred_check
      _
    $region7: #{tpu_custom_call.1} parent=1 // pred_check_branch
      %23 = sbr.rel (0) target = $region9
    $region8: #{tpu_custom_call.1} parent=1 // pred_region
      %25 = vsyncadd [#allocation6], 0
      %s27 = sshll.u32 %s1, 4
      %s28 = int_to_ptr.hbm [resolvable:$true] %s27
      %s29 = sshll.u32 [#allocation5], 4
      %s30 = int_to_ptr.vmem [resolvable:$true] %s29
      %32 = dma.hbm_to_vmem [thread:$0]  %s28, 16, %s30, [#allocation6]
    $region9: #{tpu_custom_call.1} parent=1 // pred_fallthru
      _
    // Predicated region
    $region10: #{tpu_custom_call.1} parent=1 // pred_check
      _
    $region11: #{tpu_custom_call.1} parent=1 // pred_check_branch
      %34 = sbr.rel (0) target = $region13
    $region12: #{tpu_custom_call.1} parent=1 // pred_region
      _
    $region13: #{tpu_custom_call.1} parent=1 // pred_fallthru
      _
    // Predicated region
    $region14: #{tpu_custom_call.1} parent=1 // pred_check
      _
    $region15: #{tpu_custom_call.1} parent=1 // pred_check_branch
      %36 = sbr.rel (0) target = $region17
    $region16: #{tpu_custom_call.1} parent=1 // pred_region
      %38 = dma.done [#allocation3], 128
    $region17: #{tpu_custom_call.1} parent=1 // pred_fallthru
      _
    // Predicated region
    $region18: #{tpu_custom_call.1} parent=1 // pred_check
      _
    $region19: #{tpu_custom_call.1} parent=1 // pred_check_branch
      %40 = sbr.rel (0) target = $region21
    $region20: #{tpu_custom_call.1} parent=1 // pred_region
      %42 = dma.done [#allocation6], 16
    $region21: #{tpu_custom_call.1} parent=1 // pred_fallthru
      _
    %v43 = vld [vmem:[#allocation2] sm:$0xff]
    %vm44 = vcmask 130048
    %v45 = vsel %vm44, %v43, 0.0
    %v46 = vrot.slane %v45, 4
    %v47 = vadd.f32 %v45, %v46
    %v48 = vrot.slane %v47, 2
    %v49 = vadd.f32 %v47, %v48
    %v50 = vrot.slane %v49, 1
    %v51 = vadd.f32 %v49, %v50
    %v52 = vrcp.pop 8.0
    %v53 = vmul.f32 8.0, %v52
    %v54 = vsub.f32 1.0, %v53
    %v55 = vmul.f32 %v52, %v54
    %v56 = vadd.f32 %v52, %v55
    %vm57 = vweird.f32 %v52
    %v58 = vsel %vm57, %v52, %v56
    %v59 = vmul.f32 %v51, %v58
    %v60 = vsub.f32 %v43, %v59
    %v61 = vmul.f32 %v60, %v60
    %v62 = vsel %vm44, %v61, 0.0
    %v63 = vrot.slane %v62, 4
    %v64 = vadd.f32 %v62, %v63
    %v65 = vrot.slane %v64, 2
    %v66 = vadd.f32 %v64, %v65
    %v67 = vrot.slane %v66, 1
    %v68 = vadd.f32 %v66, %v67
    %v69 = vmul.f32 %v68, %v58
    %v70 = vadd.f32 %v69, 1e-05
    %v71 = vrsqrt.pop %v70
    %v72 = vmul.f32 %v71, %v70
    %v73 = vmul.f32 %v72, %v71
    %v74 = vmul.f32 0.5, %v73
    %v75 = vsub.f32 1.5, %v74
    %v76 = vmul.f32 %v71, %v75
    %vm77 = vweird.f32 %v70
    %vm78 = vweird.f32 %v71
    %vm79 = vmor %vm77, %vm78
    %v80 = vsel %vm79, %v71, %v76
    %v81 = vmul.f32 %v60, %v80
    %v82 = vld [vmem:[#allocation5] sm:$0x1]
    %v84 = vperm.slane %v82, 0
    %v86 = vmul.f32 %v81, %v84
    %v87 = vld [vmem:[%s2] sm:$0x1]
    %v89 = vperm.slane %v87, 0
    %v91 = vadd.f32 %v86, %v89
    %92 = vst.msk [vmem:[#allocation7] sm:$0xff] %vm44, %v91
    // Predicated region
    $region22: #{tpu_custom_call.1} parent=1 // pred_check
      _
    $region23: #{tpu_custom_call.1} parent=1 // pred_check_branch
      %94 = sbr.rel (0) target = $region25
    $region24: #{tpu_custom_call.1} parent=1 // pred_region
      %96 = vsyncadd [#allocation4], 0
      %s98 = sshll.u32 [#allocation7], 4
      %s99 = int_to_ptr.vmem [resolvable:$true] %s98
      %s100 = sshll.u32 %s3, 4
      %s101 = int_to_ptr.hbm [resolvable:$true] %s100
      %103 = dma.vmem_to_hbm [thread:$0]  %s99, 128, %s101, [#allocation4]
    $region25: #{tpu_custom_call.1} parent=1 // pred_fallthru
      _
    // Predicated region
    $region26: #{tpu_custom_call.1} parent=1 // pred_check
      _
    $region27: #{tpu_custom_call.1} parent=1 // pred_check_branch
      %105 = sbr.rel (0) target = $region29
    $region28: #{tpu_custom_call.1} parent=1 // pred_region
      %107 = dma.done [#allocation4], 128
    $region29: #{tpu_custom_call.1} parent=1 // pred_fallthru
      _
    %108 = vsyncpa [#allocation3], 1
    %109 = vsyncpa [#allocation6], 1
    %110 = vsyncpa [#allocation4], 1

</llo_original>
